<compile_context>
chip_gen: v6e
topology: v6e:2x2x1
jax: 0.10.0
libtpu: 0.0.40
codegen_flags: <defaults>
</compile_context>

<pallas_src>
import functools

import jax
import jax.numpy as jnp
from jax.experimental import pallas as pl
from jax.experimental.pallas import tpu as pltpu

TOKEN_SELF_ATTN_VALUE = -5e4          # same constant as reformer_pytorch
_TILE_VMEM_BUDGET = 20 * 1024 * 1024  # per-tile (double-buffered) byte budget
_VMEM_LIMIT = 48 * 1024 * 1024        # fits v5e/v6e (128 MiB) and v7x (64 MiB)


# --------------------------------------------------------------------------
# tile pickers (blocks always satisfy the (8,128) / full-dim constraint and a
# VMEM budget so the same code is safe on v7x's smaller VMEM)
# --------------------------------------------------------------------------
def _pick_seq_tile(T, row_bytes=0):
    for t in (1024, 512, 256, 128, 64, 32, 16, 8):
        if T % t == 0 and t * row_bytes <= _TILE_VMEM_BUDGET:
            return t
    return T  # small sequences: whole axis in one block


def _pick_chunk_tile(C, bs):
    # prefer chunk tiles whose (ct*bs) lse row is a full 128-lane multiple
    for t in (C, 64, 32, 16, 8, 4, 2, 1):
        if C % t == 0 and t * bs <= 4096 and (t * bs) % 128 == 0:
            return t
    for t in (32, 16, 8, 4, 2, 1):
        if C % t == 0 and t * bs <= 4096:
            return t
    return 1


# --------------------------------------------------------------------------
# QK / V projections + LSH rotations: full-width matmuls, resident weights,
# head split folded into the out_spec / in-kernel lane slices
# --------------------------------------------------------------------------
def _qkv_rot_proj_kernel(x_ref, wqk_ref, wv_ref, wrot_ref,
                         qk_ref, v_ref, rot_ref):
    H = qk_ref.shape[0]
    dh = qk_ref.shape[2]
    rcols = rot_ref.shape[2]
    x = x_ref[0].astype(jnp.bfloat16)                      # (tt, d_model)

    qk = jnp.dot(x, wqk_ref[...], preferred_element_type=jnp.float32)
    for h in range(H):
        qk_ref[h] = qk[:, h * dh:(h + 1) * dh].astype(qk_ref.dtype)

    v = jnp.dot(x, wv_ref[...], preferred_element_type=jnp.float32)
    for h in range(H):
        v_ref[h] = v[:, h * dh:(h + 1) * dh].astype(v_ref.dtype)

    r = jnp.dot(x, wrot_ref[...], preferred_element_type=jnp.float32)
    for h in range(H):
        rot_ref[h] = r[:, h * rcols:(h + 1) * rcols].astype(rot_ref.dtype)


def pallas_qkv_rot_projection(x, wqk, wv, wrot, n_heads):
    """x: (B, T, d_model) f32; wqk/wv: (d_model, d_model) bf16 (head-chunk
    columns); wrot: (d_model, H*rcols) bf16.
    Returns qk, v: (B*H, T, dh) bf16 and rotated: (B*H, T, rcols) f32."""
    B, T, d_model = x.shape
    H = n_heads
    dh = d_model // H
    rcols = wrot.shape[1] // H
    # per-row VMEM estimate: x f32 (x2 buf) + qk/v bf16 out (x2) + rot f32 out
    # (x2) + three f32 matmul temps
    row_bytes = 28 * d_model + 12 * H * rcols
    tt = _pick_seq_tile(T, row_bytes)
    const = lambda b, t: (0, 0)
    return pl.pallas_call(
        _qkv_rot_proj_kernel,
        out_shape=(jax.ShapeDtypeStruct((B * H, T, dh), jnp.bfloat16),
                   jax.ShapeDtypeStruct((B * H, T, dh), jnp.bfloat16),
                   jax.ShapeDtypeStruct((B * H, T, rcols), jnp.float32)),
        grid=(B, T // tt),
        in_specs=[
            pl.BlockSpec((1, tt, d_model), lambda b, t: (b, t, 0)),
            pl.BlockSpec((d_model, d_model), const),
            pl.BlockSpec((d_model, d_model), const),
            pl.BlockSpec((d_model, H * rcols), const),
        ],
        out_specs=(
            pl.BlockSpec((H, tt, dh), lambda b, t: (b, t, 0)),
            pl.BlockSpec((H, tt, dh), lambda b, t: (b, t, 0)),
            pl.BlockSpec((H, tt, rcols), lambda b, t: (b, t, 0)),
        ),
        compiler_params=pltpu.CompilerParams(
            dimension_semantics=("parallel", "parallel"),
            vmem_limit_bytes=_VMEM_LIMIT),
    )(x, wqk, wv, wrot)


# --------------------------------------------------------------------------
# chunked LSH attention (look_one_back + L2-normalize fused, single 2*bs-wide
# key axis, single exp pass, lane-dense lse)
# --------------------------------------------------------------------------
def _lsh_chunk_attn_kernel(qk_ref, qkb_ref, v_ref, vb_ref, pos_ref, posb_ref,
                           bo_ref, lse_ref, *, scale):
    ct, bs = qk_ref.shape[1], qk_ref.shape[2]
    qk = qk_ref[0]                 # (ct, bs, dh)  bf16 sorted shared-QK
    v = v_ref[0]
    pos = pos_ref[0]               # (ct, 1, bs)   int32 token positions
    qk_b, v_b, pos_b = qkb_ref[0], vb_ref[0], posb_ref[0]   # boundary chunk

    # look_one_back, fused: the previous chunk of in-block chunk i is chunk
    # i-1 of this block, except i == 0 which takes the wrap-around boundary.
    if ct > 1:
        qk_prev = jnp.concatenate([qk_b, qk[:ct - 1]], axis=0)
        v_prev = jnp.concatenate([v_b, v[:ct - 1]], axis=0)
        pos_prev = jnp.concatenate([pos_b, pos[:ct - 1]], axis=0)
    else:
        qk_prev, v_prev, pos_prev = qk_b, v_b, pos_b

    # one [current ++ previous] key axis -> a single 2*bs-wide matmul
    k_all = jnp.concatenate([qk, qk_prev], axis=1)          # (ct, 2bs, dh)
    v_all = jnp.concatenate([v, v_prev], axis=1)
    pos_all = jnp.concatenate([pos, pos_prev], axis=2)       # (ct, 1, 2bs)

    # key L2-normalization (F.normalize, eps) in f32 with the softmax scale
    # folded into the normalized keys (saves a VPU pass over the score tensor)
    kf = k_all.astype(jnp.float32)
    inv = jax.lax.rsqrt(
        jnp.maximum(jnp.sum(kf * kf, axis=-1, keepdims=True), 1e-24))
    k_n = (kf * (inv * scale)).astype(jnp.bfloat16)

    s = jnp.einsum("cie,cje->cij", qk, k_n,
                   preferred_element_type=jnp.float32)        # (ct, bs, 2bs)

    # mask attention to self (same token id), like reformer_pytorch
    qpos = jnp.swapaxes(pos, 1, 2)                            # (ct, bs, 1)
    s = jnp.where(qpos == pos_all, TOKEN_SELF_ATTN_VALUE, s)

    # numerically-stable softmax, single exp pass; reciprocal on the EUP
    m = jnp.max(s, axis=-1, keepdims=True)
    e = jnp.exp(s - m)
    ssum = jnp.sum(e, axis=-1, keepdims=True)
    p = (e * pl.reciprocal(ssum, approx=True)).astype(jnp.bfloat16)
    lse = m + jnp.log(ssum)                                   # (ct, bs, 1)

    bo = jnp.einsum("cij,cje->cie", p, v_all,
                    preferred_element_type=jnp.float32)
    bo_ref[0] = bo.astype(bo_ref.dtype)
    lse_ref[...] = lse.reshape(1, ct * bs).astype(lse_ref.dtype)  # lane-dense


def pallas_lsh_chunk_attention(sqk, sv, pos):
    """sqk, sv: (BH, C, bs, dh) bf16 sorted; pos: (BH, C, 1, bs) int32.
    Returns bo: (BH, C, bs, dh) bf16 and lse: (BH, C*bs) f32 (lane-dense)."""
    BH, C, bs, dh = sqk.shape
    ct = _pick_chunk_tile(C, bs)
    kernel = functools.partial(_lsh_chunk_attn_kernel, scale=dh ** -0.5)
    cur_idx = lambda b, c: (b, c, 0, 0)
    prev_idx = lambda b, c: (b, (c * ct + C - 1) % C, 0, 0)  # wraps at c == 0
    return pl.pallas_call(
        kernel,
        out_shape=(jax.ShapeDtypeStruct((BH, C, bs, dh), jnp.bfloat16),
                   jax.ShapeDtypeStruct((BH, C * bs), jnp.float32)),
        grid=(BH, C // ct),
        in_specs=[
            pl.BlockSpec((1, ct, bs, dh), cur_idx),
            pl.BlockSpec((1, 1, bs, dh), prev_idx),
            pl.BlockSpec((1, ct, bs, dh), cur_idx),
            pl.BlockSpec((1, 1, bs, dh), prev_idx),
            pl.BlockSpec((1, ct, 1, bs), cur_idx),
            pl.BlockSpec((1, 1, 1, bs), prev_idx),
        ],
        out_specs=(pl.BlockSpec((1, ct, bs, dh), cur_idx),
                   pl.BlockSpec((1, ct * bs), lambda b, c: (b, c))),
        compiler_params=pltpu.CompilerParams(
            dimension_semantics=("parallel", "parallel")),
    )(sqk, sqk, sv, sv, pos, pos)


# --------------------------------------------------------------------------
# combine the n_hashes rounds (tiled over T)
# --------------------------------------------------------------------------
def _hash_combine_kernel(o_ref, lg_ref, out_ref):
    o = o_ref[0].astype(jnp.float32)           # (nh, tt, dh)
    lg = lg_ref[0]                             # (nh, tt) f32
    m = jnp.max(lg, axis=0, keepdims=True)
    lse = m + jnp.log(jnp.sum(jnp.exp(lg - m), axis=0, keepdims=True))
    probs = jnp.exp(lg - lse)                  # (nh, tt)
    out_ref[0] = jnp.sum(o * probs[:, :, None], axis=0).astype(out_ref.dtype)


def pallas_hash_combine(o, logits):
    """o: (BH, nh, T, dh) bf16; logits: (BH, nh, T) f32 → (BH, T, dh) bf16."""
    BH, nh, T, dh = o.shape
    row_bytes = nh * dh * 8 + nh * 8 + dh * 4 + nh * dh * 4
    tt = _pick_seq_tile(T, row_bytes)
    return pl.pallas_call(
        _hash_combine_kernel,
        out_shape=jax.ShapeDtypeStruct((BH, T, dh), jnp.bfloat16),
        grid=(BH, T // tt),
        in_specs=[pl.BlockSpec((1, nh, tt, dh), lambda b, t: (b, 0, t, 0)),
                  pl.BlockSpec((1, nh, tt), lambda b, t: (b, 0, t))],
        out_specs=pl.BlockSpec((1, tt, dh), lambda b, t: (b, t, 0)),
        compiler_params=pltpu.CompilerParams(
            dimension_semantics=("parallel", "parallel")),
    )(o, logits)


# --------------------------------------------------------------------------
# head merge + output projection: K = d_model, resident weight, no accumulator
# --------------------------------------------------------------------------
def _out_proj_kernel(o_ref, w_ref, b_ref, out_ref):
    H = o_ref.shape[0]
    merged = jnp.concatenate([o_ref[h] for h in range(H)], axis=1)  # (tt, d)
    y = jnp.dot(merged, w_ref[...], preferred_element_type=jnp.float32)
    out_ref[0] = (y + b_ref[...]).astype(out_ref.dtype)


def pallas_out_projection(o, w, b, n_heads):
    """o: (B*H, T, dh) bf16; w: (d_model, d_model) bf16; b: (1, d_model) f32.
    Returns (B, T, d_model) f32 — head merge fused into the in-kernel concat."""
    BH, T, dh = o.shape
    H = n_heads
    B = BH // H
    d_model = w.shape[1]
    row_bytes = 20 * d_model
    tt = _pick_seq_tile(T, row_bytes)
    return pl.pallas_call(
        _out_proj_kernel,
        out_shape=jax.ShapeDtypeStruct((B, T, d_model), jnp.float32),
        grid=(B, T // tt),
        in_specs=[
            pl.BlockSpec((H, tt, dh), lambda b_, t: (b_, t, 0)),
            pl.BlockSpec((d_model, d_model), lambda b_, t: (0, 0)),
            pl.BlockSpec((1, d_model), lambda b_, t: (0, 0)),
        ],
        out_specs=pl.BlockSpec((1, tt, d_model), lambda b_, t: (b_, t, 0)),
        compiler_params=pltpu.CompilerParams(
            dimension_semantics=("parallel", "parallel"),
            vmem_limit_bytes=_VMEM_LIMIT),
    )(o, w, b)


# --------------------------------------------------------------------------
# ReformerLayer forward (JAX glue around the Pallas kernels)
# --------------------------------------------------------------------------
def reformer_layer_forward(queries, keys, values, attn_mask, tau, delta, *,
                           params, n_heads, bucket_size, n_hashes, hash_key):
    del keys, values, attn_mask, tau, delta   # unused, as in the PyTorch module
    x = queries
    B, N, d_model = x.shape
    H = n_heads
    dh = d_model // H

    # ---- fit_length: pad to a multiple of 2*bucket_size (zeros, unmasked,
    # exactly like the PyTorch module which passes no input_mask) ----
    mlen = bucket_size * 2
    if N % mlen == 0:
        T, xp = N, x
    else:
        fill = mlen - N % mlen
        T = N + fill
        xp = jnp.concatenate(
            [x, jnp.zeros((B, fill, d_model), x.dtype)], axis=1)

    n_buckets = T // bucket_size
    rot_half = n_buckets // 2
    rcols = n_hashes * rot_half

    # full-width weights (head-chunk column order), bf16 for the MXU
    wqk_f = params["w_qk"].T.astype(jnp.float32)            # (d_model, H*dh)
    wqk = wqk_f.astype(jnp.bfloat16)
    wv = params["w_v"].T.astype(jnp.bfloat16)
    wout = params["w_out"].T.astype(jnp.bfloat16)            # (H*dh, d_model)
    bout = params["b_out"].reshape(1, d_model).astype(jnp.float32)

    # ---- LSH random rotations, folded into the QK weight:
    # rotated = (x @ Wqk_h) @ R == x @ (Wqk_h @ R), computed inside the QKV
    # kernel from the already-resident x tile (no HBM re-read of qk).
    # TODO(synk): reformer_pytorch draws fresh torch.randn rotations every
    # call; here rotations are drawn from a fixed JAX PRNG key.
    rot = jax.random.normal(hash_key, (dh, n_hashes, rot_half), jnp.float32)
    rot2 = rot.reshape(dh, rcols)
    fuse_rot = d_model * H * rcols * 2 <= 4 * 1024 * 1024   # keep Wrot resident
    if fuse_rot:
        wrot = jnp.einsum("dhk,kr->dhr", wqk_f.reshape(d_model, H, dh), rot2)
        wrot = wrot.reshape(d_model, H * rcols).astype(jnp.bfloat16)
    else:  # degenerate configs with huge n_buckets: rotate in glue instead
        wrot = jnp.zeros((d_model, H), jnp.bfloat16)

    # ---- shared-QK / V projections + rotations (Pallas, head split fused) ----
    qk, v, rotated = pallas_qkv_rot_projection(xp, wqk, wv, wrot, H)
    BH = B * H
    if not fuse_rot:
        rotated = jnp.einsum("btf,fr->btr", qk.astype(jnp.float32), rot2)

    # ---- bucket assignment: argmax over [rot, -rot] (glue) ----
    rotated = rotated.reshape(BH, T, n_hashes, rot_half)
    rotated = jnp.concatenate([rotated, -rotated], axis=-1)    # (.., n_buckets)
    buckets = jnp.argmax(rotated, axis=-1).astype(jnp.int32)   # (BH, T, nh)
    buckets = jnp.transpose(buckets, (0, 2, 1))                 # (BH, nh, T)
    offsets = (jnp.arange(n_hashes, dtype=jnp.int32) * n_buckets
               ).reshape(1, -1, 1)
    buckets = (buckets + offsets).reshape(BH, n_hashes * T)

    # ---- sort tokens by (bucket, position) (glue) ----
    ticker = jnp.broadcast_to(
        jnp.arange(n_hashes * T, dtype=jnp.int32), (BH, n_hashes * T))
    buckets_and_t = T * buckets + (ticker % T)
    sticker = jnp.argsort(buckets_and_t, axis=-1).astype(jnp.int32)
    undo_sort = jnp.argsort(sticker, axis=-1).astype(jnp.int32)
    st = sticker % T

    # TODO(synk): fuse the data-dependent sort/unsort gathers into the Pallas
    # kernels (PrefetchScalarGridSpec + in-kernel DMA gather) to remove two
    # full HBM round trips of the n_hashes-expanded tensors.
    sqk = jnp.take_along_axis(qk, st[:, :, None], axis=1)
    sv = jnp.take_along_axis(v, st[:, :, None], axis=1)

    C = n_hashes * n_buckets
    bs = bucket_size
    sqk = sqk.reshape(BH, C, bs, dh)
    sv = sv.reshape(BH, C, bs, dh)
    pos = st.reshape(BH, C, 1, bs)                        # lane-dense positions

    # ---- bucketed attention (Pallas; look_one_back + normalize fused) ----
    bo, slogits = pallas_lsh_chunk_attention(sqk, sv, pos)
    so = bo.reshape(BH, n_hashes * T, dh)

    # ---- unsort (glue) ----
    o = jnp.take_along_axis(so, undo_sort[:, :, None], axis=1)
    logits = jnp.take_along_axis(slogits, undo_sort, axis=1)
    o = o.reshape(BH, n_hashes, T, dh)
    logits = logits.reshape(BH, n_hashes, T)

    # ---- combine hash rounds (Pallas, tiled over T) ----
    out = pallas_hash_combine(o, logits)                  # (BH, T, dh) bf16

    # ---- head merge + output projection (Pallas, K = d_model) ----
    out = pallas_out_projection(out, wout, bout, H)        # (B, T, d_model) f32

    # ReformerLayer truncates back to the original length, returns (out, None)
    return out[:, :N, :], None


# --------------------------------------------------------------------------
if __name__ == "__main__":
    B, N, d_model, n_heads = 2, 6, 32, 4
    bucket_size, n_hashes = 4, 4
    dh = d_model // n_heads
    dim_heads = dh * n_heads

    key = jax.random.PRNGKey(0)
    k_x, k_qk, k_v, k_o, k_b, k_hash = jax.random.split(key, 6)

    params = dict(
        w_qk=jax.random.normal(k_qk, (dim_heads, d_model), jnp.float32) * 0.05,
        w_v=jax.random.normal(k_v, (dim_heads, d_model), jnp.float32) * 0.05,
        w_out=jax.random.normal(k_o, (d_model, dim_heads), jnp.float32) * 0.05,
        b_out=jax.random.normal(k_b, (d_model,), jnp.float32) * 0.05,
    )

    queries = jax.random.normal(k_x, (B, N, d_model), jnp.float32)
    keys_in = queries
    values_in = queries

    out, attn = reformer_layer_forward(
        queries, keys_in, values_in, None, None, None,
        params=params, n_heads=n_heads, bucket_size=bucket_size,
        n_hashes=n_hashes, hash_key=k_hash)

    out = jax.block_until_ready(out)
    assert out.shape == (B, N, d_model)
    assert attn is None
    assert bool(jnp.all(jnp.isfinite(out)))
    print("KERNEL_OK")
</pallas_src>

<mosaic_0001>
module attributes {stable_mosaic.version = 11 : i64} {
  func.func @_qkv_rot_proj_kernel(%arg0: i32, %arg1: i32, %arg2: memref<1x8x32xf32, #tpu.memory_space<vmem>>, %arg3: memref<32x32xbf16, #tpu.memory_space<vmem>>, %arg4: memref<32x32xbf16, #tpu.memory_space<vmem>>, %arg5: memref<32x16xbf16, #tpu.memory_space<vmem>>, %arg6: memref<4x8x8xbf16, #tpu.memory_space<vmem>>, %arg7: memref<4x8x8xbf16, #tpu.memory_space<vmem>>, %arg8: memref<4x8x4xf32, #tpu.memory_space<vmem>>) attributes {dimension_semantics = [#tpu.dimension_semantics<parallel>, #tpu.dimension_semantics<parallel>], iteration_bounds = array<i64: 2, 1>, scalar_prefetch = 0 : i64, scratch_operands = 0 : i64, tpu.core_type = #tpu.core_type<tc>, window_params = [{transform_indices = @transform_0, window_bounds = array<i64: 1, 8, 32>}, {pipeline_mode = #tpu.pipeline_mode<synchronous>, transform_indices = @transform_1, window_bounds = array<i64: 32, 32>}, {pipeline_mode = #tpu.pipeline_mode<synchronous>, transform_indices = @transform_2, window_bounds = array<i64: 32, 32>}, {pipeline_mode = #tpu.pipeline_mode<synchronous>, transform_indices = @transform_3, window_bounds = array<i64: 32, 16>}, {transform_indices = @transform_4, window_bounds = array<i64: 4, 8, 8>}, {transform_indices = @transform_5, window_bounds = array<i64: 4, 8, 8>}, {transform_indices = @transform_6, window_bounds = array<i64: 4, 8, 4>}]} {
    %c0 = arith.constant 0 : index
    %c0_0 = arith.constant 0 : index
    %c0_1 = arith.constant 0 : index
    %0 = vector.load %arg2[%c0, %c0_0, %c0_1] : memref<1x8x32xf32, #tpu.memory_space<vmem>>, vector<1x8x32xf32>
    %1 = vector.shape_cast %0 : vector<1x8x32xf32> to vector<8x32xf32>
    %2 = arith.truncf %1 : vector<8x32xf32> to vector<8x32xbf16>
    %c0_2 = arith.constant 0 : index
    %c0_3 = arith.constant 0 : index
    %3 = vector.load %arg3[%c0_2, %c0_3] : memref<32x32xbf16, #tpu.memory_space<vmem>>, vector<32x32xbf16>
    %cst = arith.constant dense<0.000000e+00> : vector<8x32xf32>
    %4 = tpu.matmul %2, %3, %cst {dimension_numbers = #tpu.dot_dimension_numbers<[1], [0], [0], [1], [0, 0, 1, 1], [], []>} : vector<8x32xbf16>, vector<32x32xbf16>, vector<8x32xf32> -> vector<8x32xf32>
    %5 = vector.extract_strided_slice %4 {offsets = [0, 0], sizes = [8, 8], strides = [1, 1]} : vector<8x32xf32> to vector<8x8xf32>
    %6 = arith.truncf %5 : vector<8x8xf32> to vector<8x8xbf16>
    %c0_4 = arith.constant 0 : index
    %c0_5 = arith.constant 0 : index
    %c0_6 = arith.constant 0 : index
    %7 = vector.load %arg6[%c0_4, %c0_5, %c0_6] : memref<4x8x8xbf16, #tpu.memory_space<vmem>>, vector<1x8x8xbf16>
    %8 = vector.shape_cast %7 : vector<1x8x8xbf16> to vector<8x8xbf16>
    %9 = vector.shape_cast %6 : vector<8x8xbf16> to vector<1x8x8xbf16>
    tpu.vector_store %arg6[%c0_4, %c0_5, %c0_6], %9 {strides = array<i32>} : memref<4x8x8xbf16, #tpu.memory_space<vmem>>, vector<1x8x8xbf16>,
    %10 = vector.extract_strided_slice %4 {offsets = [0, 8], sizes = [8, 8], strides = [1, 1]} : vector<8x32xf32> to vector<8x8xf32>
    %11 = arith.truncf %10 : vector<8x8xf32> to vector<8x8xbf16>
    %c1 = arith.constant 1 : index
    %c0_7 = arith.constant 0 : index
    %c0_8 = arith.constant 0 : index
    %12 = vector.load %arg6[%c1, %c0_7, %c0_8] : memref<4x8x8xbf16, #tpu.memory_space<vmem>>, vector<1x8x8xbf16>
    %13 = vector.shape_cast %12 : vector<1x8x8xbf16> to vector<8x8xbf16>
    %14 = vector.shape_cast %11 : vector<8x8xbf16> to vector<1x8x8xbf16>
    tpu.vector_store %arg6[%c1, %c0_7, %c0_8], %14 {strides = array<i32>} : memref<4x8x8xbf16, #tpu.memory_space<vmem>>, vector<1x8x8xbf16>,
    %15 = vector.extract_strided_slice %4 {offsets = [0, 16], sizes = [8, 8], strides = [1, 1]} : vector<8x32xf32> to vector<8x8xf32>
    %16 = arith.truncf %15 : vector<8x8xf32> to vector<8x8xbf16>
    %c2 = arith.constant 2 : index
    %c0_9 = arith.constant 0 : index
    %c0_10 = arith.constant 0 : index
    %17 = vector.load %arg6[%c2, %c0_9, %c0_10] : memref<4x8x8xbf16, #tpu.memory_space<vmem>>, vector<1x8x8xbf16>
    %18 = vector.shape_cast %17 : vector<1x8x8xbf16> to vector<8x8xbf16>
    %19 = vector.shape_cast %16 : vector<8x8xbf16> to vector<1x8x8xbf16>
    tpu.vector_store %arg6[%c2, %c0_9, %c0_10], %19 {strides = array<i32>} : memref<4x8x8xbf16, #tpu.memory_space<vmem>>, vector<1x8x8xbf16>,
    %20 = vector.extract_strided_slice %4 {offsets = [0, 24], sizes = [8, 8], strides = [1, 1]} : vector<8x32xf32> to vector<8x8xf32>
    %21 = arith.truncf %20 : vector<8x8xf32> to vector<8x8xbf16>
    %c3 = arith.constant 3 : index
    %c0_11 = arith.constant 0 : index
    %c0_12 = arith.constant 0 : index
    %22 = vector.load %arg6[%c3, %c0_11, %c0_12] : memref<4x8x8xbf16, #tpu.memory_space<vmem>>, vector<1x8x8xbf16>
    %23 = vector.shape_cast %22 : vector<1x8x8xbf16> to vector<8x8xbf16>
    %24 = vector.shape_cast %21 : vector<8x8xbf16> to vector<1x8x8xbf16>
    tpu.vector_store %arg6[%c3, %c0_11, %c0_12], %24 {strides = array<i32>} : memref<4x8x8xbf16, #tpu.memory_space<vmem>>, vector<1x8x8xbf16>,
    %c0_13 = arith.constant 0 : index
    %c0_14 = arith.constant 0 : index
    %25 = vector.load %arg4[%c0_13, %c0_14] : memref<32x32xbf16, #tpu.memory_space<vmem>>, vector<32x32xbf16>
    %cst_15 = arith.constant dense<0.000000e+00> : vector<8x32xf32>
    %26 = tpu.matmul %2, %25, %cst_15 {dimension_numbers = #tpu.dot_dimension_numbers<[1], [0], [0], [1], [0, 0, 1, 1], [], []>} : vector<8x32xbf16>, vector<32x32xbf16>, vector<8x32xf32> -> vector<8x32xf32>
    %27 = vector.extract_strided_slice %26 {offsets = [0, 0], sizes = [8, 8], strides = [1, 1]} : vector<8x32xf32> to vector<8x8xf32>
    %28 = arith.truncf %27 : vector<8x8xf32> to vector<8x8xbf16>
    %c0_16 = arith.constant 0 : index
    %c0_17 = arith.constant 0 : index
    %c0_18 = arith.constant 0 : index
    %29 = vector.load %arg7[%c0_16, %c0_17, %c0_18] : memref<4x8x8xbf16, #tpu.memory_space<vmem>>, vector<1x8x8xbf16>
    %30 = vector.shape_cast %29 : vector<1x8x8xbf16> to vector<8x8xbf16>
    %31 = vector.shape_cast %28 : vector<8x8xbf16> to vector<1x8x8xbf16>
    tpu.vector_store %arg7[%c0_16, %c0_17, %c0_18], %31 {strides = array<i32>} : memref<4x8x8xbf16, #tpu.memory_space<vmem>>, vector<1x8x8xbf16>,
    %32 = vector.extract_strided_slice %26 {offsets = [0, 8], sizes = [8, 8], strides = [1, 1]} : vector<8x32xf32> to vector<8x8xf32>
    %33 = arith.truncf %32 : vector<8x8xf32> to vector<8x8xbf16>
    %c1_19 = arith.constant 1 : index
    %c0_20 = arith.constant 0 : index
    %c0_21 = arith.constant 0 : index
    %34 = vector.load %arg7[%c1_19, %c0_20, %c0_21] : memref<4x8x8xbf16, #tpu.memory_space<vmem>>, vector<1x8x8xbf16>
    %35 = vector.shape_cast %34 : vector<1x8x8xbf16> to vector<8x8xbf16>
    %36 = vector.shape_cast %33 : vector<8x8xbf16> to vector<1x8x8xbf16>
    tpu.vector_store %arg7[%c1_19, %c0_20, %c0_21], %36 {strides = array<i32>} : memref<4x8x8xbf16, #tpu.memory_space<vmem>>, vector<1x8x8xbf16>,
    %37 = vector.extract_strided_slice %26 {offsets = [0, 16], sizes = [8, 8], strides = [1, 1]} : vector<8x32xf32> to vector<8x8xf32>
    %38 = arith.truncf %37 : vector<8x8xf32> to vector<8x8xbf16>
    %c2_22 = arith.constant 2 : index
    %c0_23 = arith.constant 0 : index
    %c0_24 = arith.constant 0 : index
    %39 = vector.load %arg7[%c2_22, %c0_23, %c0_24] : memref<4x8x8xbf16, #tpu.memory_space<vmem>>, vector<1x8x8xbf16>
    %40 = vector.shape_cast %39 : vector<1x8x8xbf16> to vector<8x8xbf16>
    %41 = vector.shape_cast %38 : vector<8x8xbf16> to vector<1x8x8xbf16>
    tpu.vector_store %arg7[%c2_22, %c0_23, %c0_24], %41 {strides = array<i32>} : memref<4x8x8xbf16, #tpu.memory_space<vmem>>, vector<1x8x8xbf16>,
    %42 = vector.extract_strided_slice %26 {offsets = [0, 24], sizes = [8, 8], strides = [1, 1]} : vector<8x32xf32> to vector<8x8xf32>
    %43 = arith.truncf %42 : vector<8x8xf32> to vector<8x8xbf16>
    %c3_25 = arith.constant 3 : index
    %c0_26 = arith.constant 0 : index
    %c0_27 = arith.constant 0 : index
    %44 = vector.load %arg7[%c3_25, %c0_26, %c0_27] : memref<4x8x8xbf16, #tpu.memory_space<vmem>>, vector<1x8x8xbf16>
    %45 = vector.shape_cast %44 : vector<1x8x8xbf16> to vector<8x8xbf16>
    %46 = vector.shape_cast %43 : vector<8x8xbf16> to vector<1x8x8xbf16>
    tpu.vector_store %arg7[%c3_25, %c0_26, %c0_27], %46 {strides = array<i32>} : memref<4x8x8xbf16, #tpu.memory_space<vmem>>, vector<1x8x8xbf16>,
    %c0_28 = arith.constant 0 : index
    %c0_29 = arith.constant 0 : index
    %47 = vector.load %arg5[%c0_28, %c0_29] : memref<32x16xbf16, #tpu.memory_space<vmem>>, vector<32x16xbf16>
    %cst_30 = arith.constant dense<0.000000e+00> : vector<8x16xf32>
    %48 = tpu.matmul %2, %47, %cst_30 {dimension_numbers = #tpu.dot_dimension_numbers<[1], [0], [0], [1], [0, 0, 1, 1], [], []>} : vector<8x32xbf16>, vector<32x16xbf16>, vector<8x16xf32> -> vector<8x16xf32>
    %49 = vector.extract_strided_slice %48 {offsets = [0, 0], sizes = [8, 4], strides = [1, 1]} : vector<8x16xf32> to vector<8x4xf32>
    %c0_31 = arith.constant 0 : index
    %c0_32 = arith.constant 0 : index
    %c0_33 = arith.constant 0 : index
    %50 = vector.load %arg8[%c0_31, %c0_32, %c0_33] : memref<4x8x4xf32, #tpu.memory_space<vmem>>, vector<1x8x4xf32>
    %51 = vector.shape_cast %50 : vector<1x8x4xf32> to vector<8x4xf32>
    %52 = vector.shape_cast %49 : vector<8x4xf32> to vector<1x8x4xf32>
    tpu.vector_store %arg8[%c0_31, %c0_32, %c0_33], %52 {strides = array<i32>} : memref<4x8x4xf32, #tpu.memory_space<vmem>>, vector<1x8x4xf32>,
    %53 = vector.extract_strided_slice %48 {offsets = [0, 4], sizes = [8, 4], strides = [1, 1]} : vector<8x16xf32> to vector<8x4xf32>
    %c1_34 = arith.constant 1 : index
    %c0_35 = arith.constant 0 : index
    %c0_36 = arith.constant 0 : index
    %54 = vector.load %arg8[%c1_34, %c0_35, %c0_36] : memref<4x8x4xf32, #tpu.memory_space<vmem>>, vector<1x8x4xf32>
    %55 = vector.shape_cast %54 : vector<1x8x4xf32> to vector<8x4xf32>
    %56 = vector.shape_cast %53 : vector<8x4xf32> to vector<1x8x4xf32>
    tpu.vector_store %arg8[%c1_34, %c0_35, %c0_36], %56 {strides = array<i32>} : memref<4x8x4xf32, #tpu.memory_space<vmem>>, vector<1x8x4xf32>,
    %57 = vector.extract_strided_slice %48 {offsets = [0, 8], sizes = [8, 4], strides = [1, 1]} : vector<8x16xf32> to vector<8x4xf32>
    %c2_37 = arith.constant 2 : index
    %c0_38 = arith.constant 0 : index
    %c0_39 = arith.constant 0 : index
    %58 = vector.load %arg8[%c2_37, %c0_38, %c0_39] : memref<4x8x4xf32, #tpu.memory_space<vmem>>, vector<1x8x4xf32>
    %59 = vector.shape_cast %58 : vector<1x8x4xf32> to vector<8x4xf32>
    %60 = vector.shape_cast %57 : vector<8x4xf32> to vector<1x8x4xf32>
    tpu.vector_store %arg8[%c2_37, %c0_38, %c0_39], %60 {strides = array<i32>} : memref<4x8x4xf32, #tpu.memory_space<vmem>>, vector<1x8x4xf32>,
    %61 = vector.extract_strided_slice %48 {offsets = [0, 12], sizes = [8, 4], strides = [1, 1]} : vector<8x16xf32> to vector<8x4xf32>
    %c3_40 = arith.constant 3 : index
    %c0_41 = arith.constant 0 : index
    %c0_42 = arith.constant 0 : index
    %62 = vector.load %arg8[%c3_40, %c0_41, %c0_42] : memref<4x8x4xf32, #tpu.memory_space<vmem>>, vector<1x8x4xf32>
    %63 = vector.shape_cast %62 : vector<1x8x4xf32> to vector<8x4xf32>
    %64 = vector.shape_cast %61 : vector<8x4xf32> to vector<1x8x4xf32>
    tpu.vector_store %arg8[%c3_40, %c0_41, %c0_42], %64 {strides = array<i32>} : memref<4x8x4xf32, #tpu.memory_space<vmem>>, vector<1x8x4xf32>,
    return
  }
  func.func @transform_0(%arg0: i32, %arg1: i32) -> (i32, i32, i32) {
    %c0_i32 = arith.constant 0 : i32
    %c0_i32_0 = arith.constant 0 : i32
    return %arg0, %arg1, %c0_i32 : i32, i32, i32
  }
  func.func @transform_1(%arg0: i32, %arg1: i32) -> (i32, i32) {
    %c0_i32 = arith.constant 0 : i32
    %c0_i32_0 = arith.constant 0 : i32
    %c0_i32_1 = arith.constant 0 : i32
    return %c0_i32, %c0_i32_0 : i32, i32
  }
  func.func @transform_2(%arg0: i32, %arg1: i32) -> (i32, i32) {
    %c0_i32 = arith.constant 0 : i32
    %c0_i32_0 = arith.constant 0 : i32
    %c0_i32_1 = arith.constant 0 : i32
    return %c0_i32, %c0_i32_0 : i32, i32
  }
  func.func @transform_3(%arg0: i32, %arg1: i32) -> (i32, i32) {
    %c0_i32 = arith.constant 0 : i32
    %c0_i32_0 = arith.constant 0 : i32
    %c0_i32_1 = arith.constant 0 : i32
    return %c0_i32, %c0_i32_0 : i32, i32
  }
  func.func @transform_4(%arg0: i32, %arg1: i32) -> (i32, i32, i32) {
    %c0_i32 = arith.constant 0 : i32
    %c0_i32_0 = arith.constant 0 : i32
    return %arg0, %arg1, %c0_i32 : i32, i32, i32
  }
  func.func @transform_5(%arg0: i32, %arg1: i32) -> (i32, i32, i32) {
    %c0_i32 = arith.constant 0 : i32
    %c0_i32_0 = arith.constant 0 : i32
    return %arg0, %arg1, %c0_i32 : i32, i32, i32
  }
  func.func @transform_6(%arg0: i32, %arg1: i32) -> (i32, i32, i32) {
    %c0_i32 = arith.constant 0 : i32
    %c0_i32_0 = arith.constant 0 : i32
    return %arg0, %arg1, %c0_i32 : i32, i32, i32
  }
}

</mosaic_0001>

<llo_original>
// kernel: tpu_custom_call.1
$region0: #{tpu_custom_call.1}
  #allocation0 [shape = 'u32[]', space=smem, size = 0x4, offset = 0x4, fixed_abs, tag = 'smem constant byte address 0x4 - core index']
  #allocation1 [shape = 'u32[144,128]{1,0:T(1,128)}', space=vmem, size = 0x12000, scoped, tag = 'internal scratch']
  %s0 = inlined_call_operand.vmem [shape: f32[2,8,32], index: 0, kind: input, shape index: {}]
  %s1 = inlined_call_operand.hbm [shape: bf16[32,32], index: 1, kind: input, shape index: {}]
  %s2 = inlined_call_operand.hbm [shape: bf16[32,32], index: 2, kind: input, shape index: {}]
  %s3 = inlined_call_operand.vmem [shape: bf16[32,16], index: 3, kind: input, shape index: {}]
  %s4 = inlined_call_operand.hbm [shape: bf16[8,8,8], index: 4, kind: output, shape index: {0}]
  %s5 = inlined_call_operand.hbm [shape: bf16[8,8,8], index: 5, kind: output, shape index: {1}]
  %s6 = inlined_call_operand.vmem [shape: f32[8,8,4], index: 6, kind: output, shape index: {2}]
  %7 = xla_tuple %s4, %s5, %s6
  %s8 = sld [smem:[#allocation0]]
  $region73: #{tpu_custom_call.1} parent=0
    _
  %s10 = ssub.s32 1, %s8
  %s11 = scalar_select 0, %s10, %s8
  $region1: #{tpu_custom_call.1} parent=0
    #allocation2 [shape = 'u8[8192]{0}', space=vmem, size = 0x2000, scoped, tag = 'input window, operand 1, single buffered']
    #allocation3 [shape = 's32[2]{0}', space=sflag, size = 0x8, scoped, tag = 'scoped memory for tpu_custom_call.1']
    #allocation4 [shape = 's32[2]{0}', space=sflag, size = 0x8, scoped, tag = 'scoped memory for tpu_custom_call.1']
    #allocation5 [shape = 'u8[8192]{0}', space=vmem, size = 0x2000, scoped, tag = 'input window, operand 2, single buffered']
    #allocation6 [shape = 's32[1]{0}', space=sflag, size = 0x4, scoped, tag = 'scoped memory for tpu_custom_call.1']
    #allocation7 [shape = 'u8[16384]{0}', space=vmem, size = 0x4000, scoped, tag = 'output window, operand 0']
    #allocation8 [shape = 'u8[16384]{0}', space=vmem, size = 0x4000, scoped, tag = 'output window, operand 1']
    #allocation9 [shape = 's32[2]{0}', space=sflag, size = 0x8, scoped, tag = 'scoped memory for tpu_custom_call.1']
    %12 = vsyncpa [#allocation3], 0
    %13 = vsyncpa [#allocation6], 0
    %14 = vsyncpa [#allocation4], 0
    %s15 = scalar_lea.sflag [#allocation4], 1
    %16 = vsyncpa %s15, 0
    %17 = vsyncpa [#allocation9], 0
    %s18 = scalar_lea.sflag [#allocation9], 1
    %19 = vsyncpa %s18, 0
    loop: start=0, step=1, limit=4
    $region2: #{tpu_custom_call.1} parent=1 // loop_pre_header
      _
    $region3: #{tpu_custom_call.1} parent=1 // loop_header
      %s21 = sphi 0, %s25
      %p22 = scmp.ge.s32.totalorder %s21, 4
      %s28 = sphi 0, %s40
      %s29 = sphi 0, %s36
      %s30 = sphi 0, %s28
      %s31 = sphi 0, %s29
      %s32 = sphi 0, %s30
      %s33 = sphi 0, %s31
      %s45 = sphi 0, %s47
      %s48 = sphi 0, %s45
      %s49 = sphi 0, %s48
      %s65 = sphi 0, %s49
      %s69 = sphi 0, %s69
      %s71 = sphi 0, %s69
      %s72 = sphi 0, %s71
      %s86 = sphi 0, %s72
      %s90 = sphi 0, %s90
      %s92 = sphi 0, %s90
      %s93 = sphi 0, %s92
      %s107 = sphi 0, %s93
      %s111 = sphi 0, %s111
      %s113 = sphi 0, %s111
      %s114 = sphi 0, %s113
      %s128 = sphi 0, %s114
      %s136 = sphi 0, %s138
      %s139 = sphi 0, %s136
      %s140 = sphi 0, %s139
      %s156 = sphi 0, %s140
      %s164 = sphi 0, %s166
      %s167 = sphi 0, %s164
      %s168 = sphi 0, %s167
      %s184 = sphi 0, %s168
      %s192 = sphi 0, %s194
      %s195 = sphi 0, %s192
      %s196 = sphi 0, %s195
      %s212 = sphi 0, %s196
    $region4: #{tpu_custom_call.1} parent=1 // loop_header_branch
      %24 = sbr.rel (%p22) target = $region8
    $region5: #{tpu_custom_call.1} parent=1 // loop_body
      %s26 = ssub.s32 %s21, 1
      %s27 = ssub.s32 %s21, 2
      %s34 = sadd.s32 1, %s29
      %p35 = scmp.ge.s32.totalorder %s34, 1
      %s36 = scalar_select %p35, 0, %s34
      %s37 = sadd.s32 1, %s28
      %s38 = scalar_select %p35, %s37, %s28
      %p39 = scmp.ge.s32.totalorder %s38, 2
      %s40 = scalar_select %p39, 0, %s38
      %s41 = ssub.s32 %s28, %s40
      %s42 = ssub.s32 %s29, %s36
      %s43 = sor.u32 %s41, %s42
      %p44 = scmp.eq.s32.totalorder %s43, 0
      %s46 = sadd.s32 %s45, 1
      %s47 = scalar_select %p44, %s45, %s46
      %p50 = pneg %p44
      %p51 = scmp.eq.s32.totalorder %s21, 1
      %p52 = por %p50, %p51
      %p53 = scmp.ne.s32.totalorder %s45, %s48
      %p54 = scmp.eq.s32.totalorder %s21, 0
      %p55 = por %p53, %p54
      %p56 = scmp.ne.s32.totalorder %s45, %s48
      %p57 = scmp.eq.s32.totalorder %s26, 1
      %p58 = por %p56, %p57
      %p59 = scmp.ne.s32.totalorder %s48, %s49
      %p60 = scmp.eq.s32.totalorder %s26, 0
      %p61 = por %p59, %p60
      %p62 = scmp.ne.s32.totalorder %s48, %s49
      %p63 = scmp.eq.s32.totalorder %s27, 1
      %p64 = por %p62, %p63
      %p66 = scmp.ne.s32.totalorder %s49, %s65
      %p67 = scmp.eq.s32.totalorder %s27, 0
      %p68 = por %p66, %p67
      %s70 = sadd.s32 %s69, 1
      %p73 = scmp.eq.s32.totalorder %s21, 1
      %p74 = scmp.ne.s32.totalorder %s69, %s71
      %p75 = scmp.eq.s32.totalorder %s21, 0
      %p76 = por %p74, %p75
      %p77 = scmp.ne.s32.totalorder %s69, %s71
      %p78 = scmp.eq.s32.totalorder %s26, 1
      %p79 = por %p77, %p78
      %p80 = scmp.ne.s32.totalorder %s71, %s72
      %p81 = scmp.eq.s32.totalorder %s26, 0
      %p82 = por %p80, %p81
      %p83 = scmp.ne.s32.totalorder %s71, %s72
      %p84 = scmp.eq.s32.totalorder %s27, 1
      %p85 = por %p83, %p84
      %p87 = scmp.ne.s32.totalorder %s72, %s86
      %p88 = scmp.eq.s32.totalorder %s27, 0
      %p89 = por %p87, %p88
      %s91 = sadd.s32 %s90, 1
      %p94 = scmp.eq.s32.totalorder %s21, 1
      %p95 = scmp.ne.s32.totalorder %s90, %s92
      %p96 = scmp.eq.s32.totalorder %s21, 0
      %p97 = por %p95, %p96
      %p98 = scmp.ne.s32.totalorder %s90, %s92
      %p99 = scmp.eq.s32.totalorder %s26, 1
      %p100 = por %p98, %p99
      %p101 = scmp.ne.s32.totalorder %s92, %s93
      %p102 = scmp.eq.s32.totalorder %s26, 0
      %p103 = por %p101, %p102
      %p104 = scmp.ne.s32.totalorder %s92, %s93
      %p105 = scmp.eq.s32.totalorder %s27, 1
      %p106 = por %p104, %p105
      %p108 = scmp.ne.s32.totalorder %s93, %s107
      %p109 = scmp.eq.s32.totalorder %s27, 0
      %p110 = por %p108, %p109
      %s112 = sadd.s32 %s111, 1
      %p115 = scmp.eq.s32.totalorder %s21, 1
      %p116 = scmp.ne.s32.totalorder %s111, %s113
      %p117 = scmp.eq.s32.totalorder %s21, 0
      %p118 = por %p116, %p117
      %p119 = scmp.ne.s32.totalorder %s111, %s113
      %p120 = scmp.eq.s32.totalorder %s26, 1
      %p121 = por %p119, %p120
      %p122 = scmp.ne.s32.totalorder %s113, %s114
      %p123 = scmp.eq.s32.totalorder %s26, 0
      %p124 = por %p122, %p123
      %p125 = scmp.ne.s32.totalorder %s113, %s114
      %p126 = scmp.eq.s32.totalorder %s27, 1
      %p127 = por %p125, %p126
      %p129 = scmp.ne.s32.totalorder %s114, %s128
      %p130 = scmp.eq.s32.totalorder %s27, 0
      %p131 = por %p129, %p130
      %s132 = ssub.s32 %s28, %s40
      %s133 = ssub.s32 %s29, %s36
      %s134 = sor.u32 %s132, %s133
      %p135 = scmp.eq.s32.totalorder %s134, 0
      %s137 = sadd.s32 %s136, 1
      %s138 = scalar_select %p135, %s136, %s137
      %p141 = pneg %p135
      %p142 = scmp.eq.s32.totalorder %s21, 1
      %p143 = por %p141, %p142
      %p144 = scmp.ne.s32.totalorder %s136, %s139
      %p145 = scmp.eq.s32.totalorder %s21, 0
      %p146 = por %p144, %p145
      %p147 = scmp.ne.s32.totalorder %s136, %s139
      %p148 = scmp.eq.s32.totalorder %s26, 1
      %p149 = por %p147, %p148
      %p150 = scmp.ne.s32.totalorder %s139, %s140
      %p151 = scmp.eq.s32.totalorder %s26, 0
      %p152 = por %p150, %p151
      %p153 = scmp.ne.s32.totalorder %s139, %s140
      %p154 = scmp.eq.s32.totalorder %s27, 1
      %p155 = por %p153, %p154
      %p157 = scmp.ne.s32.totalorder %s140, %s156
      %p158 = scmp.eq.s32.totalorder %s27, 0
      %p159 = por %p157, %p158
      %s160 = ssub.s32 %s28, %s40
      %s161 = ssub.s32 %s29, %s36
      %s162 = sor.u32 %s160, %s161
      %p163 = scmp.eq.s32.totalorder %s162, 0
      %s165 = sadd.s32 %s164, 1
      %s166 = scalar_select %p163, %s164, %s165
      %p169 = pneg %p163
      %p170 = scmp.eq.s32.totalorder %s21, 1
      %p171 = por %p169, %p170
      %p172 = scmp.ne.s32.totalorder %s164, %s167
      %p173 = scmp.eq.s32.totalorder %s21, 0
      %p174 = por %p172, %p173
      %p175 = scmp.ne.s32.totalorder %s164, %s167
      %p176 = scmp.eq.s32.totalorder %s26, 1
      %p177 = por %p175, %p176
      %p178 = scmp.ne.s32.totalorder %s167, %s168
      %p179 = scmp.eq.s32.totalorder %s26, 0
      %p180 = por %p178, %p179
      %p181 = scmp.ne.s32.totalorder %s167, %s168
      %p182 = scmp.eq.s32.totalorder %s27, 1
      %p183 = por %p181, %p182
      %p185 = scmp.ne.s32.totalorder %s168, %s184
      %p186 = scmp.eq.s32.totalorder %s27, 0
      %p187 = por %p185, %p186
      %s188 = ssub.s32 %s28, %s40
      %s189 = ssub.s32 %s29, %s36
      %s190 = sor.u32 %s188, %s189
      %p191 = scmp.eq.s32.totalorder %s190, 0
      %s193 = sadd.s32 %s192, 1
      %s194 = scalar_select %p191, %s192, %s193
      %p197 = pneg %p191
      %p198 = scmp.eq.s32.totalorder %s21, 1
      %p199 = por %p197, %p198
      %p200 = scmp.ne.s32.totalorder %s192, %s195
      %p201 = scmp.eq.s32.totalorder %s21, 0
      %p202 = por %p200, %p201
      %p203 = scmp.ne.s32.totalorder %s192, %s195
      %p204 = scmp.eq.s32.totalorder %s26, 1
      %p205 = por %p203, %p204
      %p206 = scmp.ne.s32.totalorder %s195, %s196
      %p207 = scmp.eq.s32.totalorder %s26, 0
      %p208 = por %p206, %p207
      %p209 = scmp.ne.s32.totalorder %s195, %s196
      %p210 = scmp.eq.s32.totalorder %s27, 1
      %p211 = por %p209, %p210
      %p213 = scmp.ne.s32.totalorder %s196, %s212
      %p214 = scmp.eq.s32.totalorder %s27, 0
      %p215 = por %p213, %p214
      %p216 = scmp.le.s32.totalorder 1, %s21
      %p217 = scmp.lt.s32.totalorder %s21, 3
      %p218 = pnand %p216, %p217
      %p219 = pneg %p218
      // Predicated region
      $region9: #{tpu_custom_call.1} parent=5 // pred_check
        _
      $region10: #{tpu_custom_call.1} parent=5 // pred_check_branch
        %221 = sbr.rel (%p218) target = $region12
      $region11: #{tpu_custom_call.1} parent=5 // pred_region
        %s222 = ssub.s32 %s21, 1
        // Predicated region
        $region13: #{tpu_custom_call.1} parent=11 // pred_check
          %p223 = pneg %p82
        $region14: #{tpu_custom_call.1} parent=11 // pred_check_branch
          %225 = sbr.rel (%p223) target = $region16
        $region15: #{tpu_custom_call.1} parent=11 // pred_region
          %s227 = ssub.s32 256, 256
          %228 = vsyncadd [#allocation3], %s227
          %s229 = sshll.u32 [#allocation2], 4
          %s230 = int_to_ptr.vmem [resolvable:$true] %s229
          %235 = dma.hbm_to_vmem [thread:$0]  %s1, 256, %s230, [#allocation3], 64, 64, 4
        $region16: #{tpu_custom_call.1} parent=11 // pred_fallthru
          _
        // Predicated region
        $region17: #{tpu_custom_call.1} parent=11 // pred_check
          %p236 = pneg %p103
        $region18: #{tpu_custom_call.1} parent=11 // pred_check_branch
          %238 = sbr.rel (%p236) target = $region20
        $region19: #{tpu_custom_call.1} parent=11 // pred_region
          %s240 = ssub.s32 256, 256
          %241 = vsyncadd [#allocation6], %s240
          %s242 = sshll.u32 [#allocation5], 4
          %s243 = int_to_ptr.vmem [resolvable:$true] %s242
          %248 = dma.hbm_to_vmem [thread:$0]  %s2, 256, %s243, [#allocation6], 64, 64, 4
        $region20: #{tpu_custom_call.1} parent=11 // pred_fallthru
          _
        // Predicated region
        $region21: #{tpu_custom_call.1} parent=11 // pred_check
          %p249 = pneg %p124
        $region22: #{tpu_custom_call.1} parent=11 // pred_check_branch
          %251 = sbr.rel (%p249) target = $region24
        $region23: #{tpu_custom_call.1} parent=11 // pred_region
          _
        $region24: #{tpu_custom_call.1} parent=11 // pred_fallthru
          _
      $region12: #{tpu_custom_call.1} parent=5 // pred_fallthru
        _
      %p252 = scmp.lt.s32.totalorder %s21, 2
      // Predicated region
      $region25: #{tpu_custom_call.1} parent=5 // pred_check
        %p253 = pneg %p252
      $region26: #{tpu_custom_call.1} parent=5 // pred_check_branch
        %255 = sbr.rel (%p253) target = $region28
      $region27: #{tpu_custom_call.1} parent=5 // pred_region
        // Predicated region
        $region29: #{tpu_custom_call.1} parent=27 // pred_check
          %p256 = pneg %p55
        $region30: #{tpu_custom_call.1} parent=27 // pred_check_branch
          %258 = sbr.rel (%p256) target = $region32
        $region31: #{tpu_custom_call.1} parent=27 // pred_region
          %p259 = scmp.lt.s32.totalorder %s28, 1
          %s260 = scalar_select %p259, %s28, 1
          %p261 = scmp.lt.s32.totalorder %s29, 0
          %s262 = scalar_select %p261, %s29, 0
          %s263 = sadd.s32 %s262, %s260
          %s264 = smul.addr %s263, 8
          %s265 = scalar_lea.vmem %s0, %s264
        $region32: #{tpu_custom_call.1} parent=27 // pred_fallthru
          _
      $region28: #{tpu_custom_call.1} parent=5 // pred_fallthru
        _
      %p266 = scmp.le.s32.totalorder 1, %s21
      %p267 = scmp.lt.s32.totalorder %s21, 3
      %p268 = pnand %p266, %p267
      %p269 = pneg %p268
      // Predicated region
      $region33: #{tpu_custom_call.1} parent=5 // pred_check
        _
      $region34: #{tpu_custom_call.1} parent=5 // pred_check_branch
        %271 = sbr.rel (%p268) target = $region36
      $region35: #{tpu_custom_call.1} parent=5 // pred_region
        %s272 = ssub.s32 %s21, 1
        // Predicated region
        $region37: #{tpu_custom_call.1} parent=35 // pred_check
          %p273 = pneg %p82
        $region38: #{tpu_custom_call.1} parent=35 // pred_check_branch
          %275 = sbr.rel (%p273) target = $region40
        $region39: #{tpu_custom_call.1} parent=35 // pred_region
          %276 = dma.done [#allocation3], 256
        $region40: #{tpu_custom_call.1} parent=35 // pred_fallthru
          _
        // Predicated region
        $region41: #{tpu_custom_call.1} parent=35 // pred_check
          %p277 = pneg %p103
        $region42: #{tpu_custom_call.1} parent=35 // pred_check_branch
          %279 = sbr.rel (%p277) target = $region44
        $region43: #{tpu_custom_call.1} parent=35 // pred_region
          %280 = dma.done [#allocation6], 256
        $region44: #{tpu_custom_call.1} parent=35 // pred_fallthru
          _
        %p281 = scmp.lt.s32.totalorder %s30, 1
        %s282 = scalar_select %p281, %s30, 1
        %p283 = scmp.lt.s32.totalorder %s31, 0
        %s284 = scalar_select %p283, %s31, 0
        %s285 = sadd.s32 %s284, %s282
        %s286 = smul.addr %s285, 8
        %s287 = scalar_lea.vmem %s0, %s286
        %p288 = pneg %p61
        %p289 = pneg %p58
        %p290 = pneg %p82
        %p291 = pneg %p79
        %p292 = pneg %p103
        %p293 = pneg %p100
        %p294 = pneg %p124
        %p295 = pneg %p121
        %p296 = pneg %p152
        %p297 = pneg %p149
        %s298 = sand.u32 %s139, 1
        %s299 = scalar_lea.sflag [#allocation4], %s298
        %s300 = sand.u32 %s139, 1
        %s301 = smul.addr %s300, 16
        %s302 = scalar_lea.vmem [#allocation7], %s301
        %p303 = pneg %p180
        %p304 = pneg %p177
        %s305 = sand.u32 %s167, 1
        %s306 = scalar_lea.sflag [#allocation9], %s305
        %s307 = sand.u32 %s167, 1
        %s308 = smul.addr %s307, 16
        %s309 = scalar_lea.vmem [#allocation8], %s308
        %p310 = pneg %p208
        %p311 = pneg %p205
        %s312 = smul.u32 4, %s30
        %p313 = scmp.lt.s32.totalorder %s312, 7
        %s314 = scalar_select %p313, %s312, 7
        %p315 = scmp.lt.s32.totalorder %s31, 0
        %s316 = scalar_select %p315, %s31, 0
        %s317 = sadd.s32 %s316, %s314
        %s318 = smul.addr %s317, 8
        %s319 = scalar_lea.vmem %s6, %s318
        %p320 = scmp.lt.s32.totalorder %s30, 1
        %s321 = scalar_select %p320, %s30, 1
        %p322 = scmp.lt.s32.totalorder %s31, 0
        %s323 = scalar_select %p322, %s31, 0
        %s324 = sadd.s32 %s323, %s321
        %s325 = smul.addr %s324, 8
        %s326 = scalar_lea.vmem %s0, %s325
        %s327 = smul.u32 4, %s30
        %s328 = smul.u32 4, %s30
        %s329 = smul.u32 4, %s30
        %p330 = scmp.lt.s32.totalorder %s329, 7
        %s331 = scalar_select %p330, %s329, 7
        %p332 = scmp.lt.s32.totalorder %s31, 0
        %s333 = scalar_select %p332, %s31, 0
        %s334 = sadd.s32 %s333, %s331
        %s335 = smul.addr %s334, 8
        %s336 = scalar_lea.vmem %s6, %s335
        %s337 = smul.u32 4, %s30
        %v339 = vld [vmem:[%s326] sm:$0xff]
        %v340 = vpack.c.bf16 %v339, %v339
        %v341 = vld [vmem:[#allocation2] sm:$0xf]
        %v342 = vld [vmem:[#allocation2 + $0x4] sm:$0xf]
        %v343 = vld [vmem:[#allocation2 + $0x8] sm:$0xf]
        %v344 = vld [vmem:[#allocation2 + $0xc] sm:$0xf]
        %v349 = vunpack.c.l.b16 %v341
        %v350 = vunpack.c.l.b16 %v342
        %v351 = vunpack.c.l.b16 %v343
        %v352 = vunpack.c.l.b16 %v344
        %v353 = vpack.c.b16 %v350, %v349
        %v354 = vpack.c.b16 %v352, %v351
        %vm357 = vcmask 261120
        %v359 = vsel %vm357, %v340, 0
        %361 = vmatprep.subr.bf16.mxu0 0
        %362 = vmatpush1.bf16.msra.mxu0 0
        %363 = vmatprep.subr.bf16.mxu0 0
        %364 = vmatpush1.bf16.msra.mxu0 0
        %365 = vmatprep.subr.bf16.mxu0 0
        %366 = vmatpush1.bf16.msra.mxu0 0
        %367 = vmatprep.subr.bf16.mxu0 0
        %368 = vmatpush1.bf16.msra.mxu0 0
        %369 = vmatprep.subr.bf16.mxu0 0
        %370 = vmatpush1.bf16.msra.mxu0 0
        %371 = vmatprep.subr.bf16.mxu0 0
        %372 = vmatpush1.bf16.msra.mxu0 0
        %373 = vmatprep.subr.bf16.mxu0 0
        %374 = vmatpush1.bf16.msra.mxu0 %v354
        %375 = vmatprep.subr.bf16.mxu0 0
        %376 = vmatpush1.bf16.msra.mxu0 %v353
        %377 = vmatprep.subr.bf16.mxu0 0
        %378 = vmatpush2.bf16.msra.mxu0 0
        %379 = vmatprep.subr.bf16.mxu0 0
        %380 = vmatpush2.bf16.msra.mxu0 0
        %381 = vmatprep.subr.bf16.mxu0 0
        %382 = vmatpush2.bf16.msra.mxu0 0
        %383 = vmatprep.subr.bf16.mxu0 0
        %384 = vmatpush2.bf16.msra.mxu0 0
        %385 = vmatprep.subr.bf16.mxu0 0
        %386 = vmatpush2.bf16.msra.mxu0 0
        %387 = vmatprep.subr.bf16.mxu0 0
        %388 = vmatpush2.bf16.msra.mxu0 0
        %389 = vmatprep.subr.bf16.mxu0 0
        %390 = vmatpush2.bf16.msra.mxu0 0
        %391 = vmatprep.subr.bf16.mxu0 0
        %392 = vmatpush2.bf16.msra.mxu0 0
        %393 = vmatprep.mubr.bf16.mxu0 0
        %394 = vmatmul.mubr.bf16.gmra.mxu0 %v359
        %v395 = vpop.f32.mrf.mxu0
        %v396 = vadd.f32 0.0, %v395
        %v397 = vpop.f32.mrf.mxu0
        %v398 = vpop.f32.mrf.mxu0
        %v399 = vpop.f32.mrf.mxu0
        %400 = vdwg.mxu0
        %v401 = vpack.c.bf16 %v396, %v396
        %vm402 = vcmask 60416
        %403 = vst.msk [vmem:[%s302] sm:$0xf] %vm402, %v401
        %v405 = vunpack.c.l.b16 %v401
        %v406 = vpack.c.b16 %v405, %v405
        %407 = vrot.lane.b32.xlu0 %v406, 120
        %v408 = vpop.permute.xlu0 %407
        %s410 = scalar_lea.vmem %s302, 4 [#allocation7]
        %411 = vst.msk [vmem:[%s410] sm:$0xf] %vm402, %v408
        %412 = vrot.lane.b32.xlu0 %v406, 112
        %v413 = vpop.permute.xlu0 %412
        %s415 = scalar_lea.vmem %s302, 8 [#allocation7]
        %416 = vst.msk [vmem:[%s415] sm:$0xf] %vm402, %v413
        %417 = vrot.lane.b32.xlu0 %v406, 104
        %v418 = vpop.permute.xlu0 %417
        %s420 = scalar_lea.vmem %s302, 12 [#allocation7]
        %421 = vst.msk [vmem:[%s420] sm:$0xf] %vm402, %v418
        %v422 = vld [vmem:[#allocation5] sm:$0xf]
        %v423 = vld [vmem:[#allocation5 + $0x4] sm:$0xf]
        %v424 = vld [vmem:[#allocation5 + $0x8] sm:$0xf]
        %v425 = vld [vmem:[#allocation5 + $0xc] sm:$0xf]
        %v430 = vunpack.c.l.b16 %v422
        %v431 = vunpack.c.l.b16 %v423
        %v432 = vunpack.c.l.b16 %v424
        %v433 = vunpack.c.l.b16 %v425
        %v434 = vpack.c.b16 %v431, %v430
        %v435 = vpack.c.b16 %v433, %v432
        %438 = vmatprep.subr.bf16.mxu0 0
        %439 = vmatpush1.bf16.msra.mxu0 0
        %440 = vmatprep.subr.bf16.mxu0 0
        %441 = vmatpush1.bf16.msra.mxu0 0
        %442 = vmatprep.subr.bf16.mxu0 0
        %443 = vmatpush1.bf16.msra.mxu0 0
        %444 = vmatprep.subr.bf16.mxu0 0
        %445 = vmatpush1.bf16.msra.mxu0 0
        %446 = vmatprep.subr.bf16.mxu0 0
        %447 = vmatpush1.bf16.msra.mxu0 0
        %448 = vmatprep.subr.bf16.mxu0 0
        %449 = vmatpush1.bf16.msra.mxu0 0
        %450 = vmatprep.subr.bf16.mxu0 0
        %451 = vmatpush1.bf16.msra.mxu0 %v435
        %452 = vmatprep.subr.bf16.mxu0 0
        %453 = vmatpush1.bf16.msra.mxu0 %v434
        %454 = vmatprep.subr.bf16.mxu0 0
        %455 = vmatpush2.bf16.msra.mxu0 0
        %456 = vmatprep.subr.bf16.mxu0 0
        %457 = vmatpush2.bf16.msra.mxu0 0
        %458 = vmatprep.subr.bf16.mxu0 0
        %459 = vmatpush2.bf16.msra.mxu0 0
        %460 = vmatprep.subr.bf16.mxu0 0
        %461 = vmatpush2.bf16.msra.mxu0 0
        %462 = vmatprep.subr.bf16.mxu0 0
        %463 = vmatpush2.bf16.msra.mxu0 0
        %464 = vmatprep.subr.bf16.mxu0 0
        %465 = vmatpush2.bf16.msra.mxu0 0
        %466 = vmatprep.subr.bf16.mxu0 0
        %467 = vmatpush2.bf16.msra.mxu0 0
        %468 = vmatprep.subr.bf16.mxu0 0
        %469 = vmatpush2.bf16.msra.mxu0 0
        %470 = vmatprep.mubr.bf16.mxu0 0
        %471 = vmatmul.mubr.bf16.gmra.mxu0 %v359
        %v472 = vpop.f32.mrf.mxu0
        %v473 = vadd.f32 0.0, %v472
        %v474 = vpop.f32.mrf.mxu0
        %v475 = vpop.f32.mrf.mxu0
        %v476 = vpop.f32.mrf.mxu0
        %477 = vdwg.mxu0
        %v478 = vpack.c.bf16 %v473, %v473
        %479 = vst.msk [vmem:[%s309] sm:$0xf] %vm402, %v478
        %v481 = vunpack.c.l.b16 %v478
        %v482 = vpack.c.b16 %v481, %v481
        %483 = vrot.lane.b32.xlu0 %v482, 120
        %v484 = vpop.permute.xlu0 %483
        %s486 = scalar_lea.vmem %s309, 4 [#allocation8]
        %487 = vst.msk [vmem:[%s486] sm:$0xf] %vm402, %v484
        %488 = vrot.lane.b32.xlu0 %v482, 112
        %v489 = vpop.permute.xlu0 %488
        %s491 = scalar_lea.vmem %s309, 8 [#allocation8]
        %492 = vst.msk [vmem:[%s491] sm:$0xf] %vm402, %v489
        %493 = vrot.lane.b32.xlu0 %v482, 104
        %v494 = vpop.permute.xlu0 %493
        %s496 = scalar_lea.vmem %s309, 12 [#allocation8]
        %497 = vst.msk [vmem:[%s496] sm:$0xf] %vm402, %v494
        %v498 = vld [vmem:[%s3] sm:$0xf]
        %v499 = vld [vmem:[%s3 + $0x4] sm:$0xf]
        %v500 = vld [vmem:[%s3 + $0x8] sm:$0xf]
        %v501 = vld [vmem:[%s3 + $0xc] sm:$0xf]
        %v506 = vunpack.c.l.b16 %v498
        %v507 = vunpack.c.l.b16 %v499
        %v508 = vunpack.c.l.b16 %v500
        %v509 = vunpack.c.l.b16 %v501
        %v510 = vpack.c.b16 %v507, %v506
        %v511 = vpack.c.b16 %v509, %v508
        %514 = vmatprep.subr.bf16.mxu0 0
        %515 = vmatpush1.bf16.msra.mxu0 0
        %516 = vmatprep.subr.bf16.mxu0 0
        %517 = vmatpush1.bf16.msra.mxu0 0
        %518 = vmatprep.subr.bf16.mxu0 0
        %519 = vmatpush1.bf16.msra.mxu0 0
        %520 = vmatprep.subr.bf16.mxu0 0
        %521 = vmatpush1.bf16.msra.mxu0 0
        %522 = vmatprep.subr.bf16.mxu0 0
        %523 = vmatpush1.bf16.msra.mxu0 0
        %524 = vmatprep.subr.bf16.mxu0 0
        %525 = vmatpush1.bf16.msra.mxu0 0
        %526 = vmatprep.subr.bf16.mxu0 0
        %527 = vmatpush1.bf16.msra.mxu0 %v511
        %528 = vmatprep.subr.bf16.mxu0 0
        %529 = vmatpush1.bf16.msra.mxu0 %v510
        %530 = vmatprep.subr.bf16.mxu0 0
        %531 = vmatpush2.bf16.msra.mxu0 0
        %532 = vmatprep.subr.bf16.mxu0 0
        %533 = vmatpush2.bf16.msra.mxu0 0
        %534 = vmatprep.subr.bf16.mxu0 0
        %535 = vmatpush2.bf16.msra.mxu0 0
        %536 = vmatprep.subr.bf16.mxu0 0
        %537 = vmatpush2.bf16.msra.mxu0 0
        %538 = vmatprep.subr.bf16.mxu0 0
        %539 = vmatpush2.bf16.msra.mxu0 0
        %540 = vmatprep.subr.bf16.mxu0 0
        %541 = vmatpush2.bf16.msra.mxu0 0
        %542 = vmatprep.subr.bf16.mxu0 0
        %543 = vmatpush2.bf16.msra.mxu0 0
        %544 = vmatprep.subr.bf16.mxu0 0
        %545 = vmatpush2.bf16.msra.mxu0 0
        %546 = vmatprep.mubr.bf16.mxu0 0
        %547 = vmatmul.mubr.bf16.gmra.mxu0 %v359
        %v548 = vpop.f32.mrf.mxu0
        %v549 = vadd.f32 0.0, %v548
        %v550 = vpop.f32.mrf.mxu0
        %v551 = vpop.f32.mrf.mxu0
        %v552 = vpop.f32.mrf.mxu0
        %553 = vdwg.mxu0
        %vm554 = vcmask 31744
        %555 = vst.msk [vmem:[%s336] sm:$0xff] %vm554, %v549
        %557 = vrot.lane.b32.xlu0 %v549, 124
        %v558 = vpop.permute.xlu0 %557
        %s560 = scalar_lea.vmem %s336, 8
        %561 = vst.msk [vmem:[%s560] sm:$0xff] %vm554, %v558
        %562 = vrot.lane.b32.xlu0 %v549, 120
        %v563 = vpop.permute.xlu0 %562
        %s565 = scalar_lea.vmem %s336, 16
        %566 = vst.msk [vmem:[%s565] sm:$0xff] %vm554, %v563
        %567 = vrot.lane.b32.xlu0 %v549, 116
        %v568 = vpop.permute.xlu0 %567
        %s570 = scalar_lea.vmem %s336, 24
        %571 = vst.msk [vmem:[%s570] sm:$0xff] %vm554, %v568
        %s572 = sand.u32 %s139, 1
        %s573 = scalar_lea.sflag [#allocation4], %s572
        %s574 = sand.u32 %s139, 1
        %s575 = smul.addr %s574, 16
        %s576 = scalar_lea.vmem [#allocation7], %s575
        %s577 = sand.u32 %s167, 1
        %s578 = scalar_lea.sflag [#allocation9], %s577
        %s579 = sand.u32 %s167, 1
        %s580 = smul.addr %s579, 16
        %s581 = scalar_lea.vmem [#allocation8], %s580
        %s582 = smul.u32 4, %s30
        %p583 = scmp.lt.s32.totalorder %s582, 7
        %s584 = scalar_select %p583, %s582, 7
        %p585 = scmp.lt.s32.totalorder %s31, 0
        %s586 = scalar_select %p585, %s31, 0
        %s587 = sadd.s32 %s586, %s584
        %s588 = smul.addr %s587, 8
        %s589 = scalar_lea.vmem %s6, %s588
        // Predicated region
        $region45: #{tpu_custom_call.1} parent=35 // pred_check
          %p590 = pneg %p149
        $region46: #{tpu_custom_call.1} parent=35 // pred_check_branch
          %592 = sbr.rel (%p590) target = $region48
        $region47: #{tpu_custom_call.1} parent=35 // pred_region
          %s593 = smul.u32 4, %s30
          %s595 = ssub.s32 256, 256
          %596 = vsyncadd %s573, %s595
          %s597 = sadd.s32 %s31, %s593
          %s598 = smul.addr %s597, 64
          %s599 = scalar_lea.hbm %s4, %s598
          %s600 = sshll.u32 %s576, 4
          %s601 = int_to_ptr.vmem [resolvable:$true] %s600
          %606 = dma.vmem_to_hbm [thread:$0]  %s601, 256, %s599, %s573, 64, 64, 4
        $region48: #{tpu_custom_call.1} parent=35 // pred_fallthru
          _
        // Predicated region
        $region49: #{tpu_custom_call.1} parent=35 // pred_check
          %p607 = pneg %p177
        $region50: #{tpu_custom_call.1} parent=35 // pred_check_branch
          %609 = sbr.rel (%p607) target = $region52
        $region51: #{tpu_custom_call.1} parent=35 // pred_region
          %s610 = smul.u32 4, %s30
          %s612 = ssub.s32 256, 256
          %613 = vsyncadd %s578, %s612
          %s614 = sadd.s32 %s31, %s610
          %s615 = smul.addr %s614, 64
          %s616 = scalar_lea.hbm %s5, %s615
          %s617 = sshll.u32 %s581, 4
          %s618 = int_to_ptr.vmem [resolvable:$true] %s617
          %623 = dma.vmem_to_hbm [thread:$0]  %s618, 256, %s616, %s578, 64, 64, 4
        $region52: #{tpu_custom_call.1} parent=35 // pred_fallthru
          _
        // Predicated region
        $region53: #{tpu_custom_call.1} parent=35 // pred_check
          %p624 = pneg %p205
        $region54: #{tpu_custom_call.1} parent=35 // pred_check_branch
          %626 = sbr.rel (%p624) target = $region56
        $region55: #{tpu_custom_call.1} parent=35 // pred_region
          %s627 = smul.u32 4, %s30
        $region56: #{tpu_custom_call.1} parent=35 // pred_fallthru
          _
      $region36: #{tpu_custom_call.1} parent=5 // pred_fallthru
        _
      %p628 = scmp.le.s32.totalorder 2, %s21
      // Predicated region
      $region57: #{tpu_custom_call.1} parent=5 // pred_check
        %p629 = pneg %p628
      $region58: #{tpu_custom_call.1} parent=5 // pred_check_branch
        %631 = sbr.rel (%p629) target = $region60
      $region59: #{tpu_custom_call.1} parent=5 // pred_region
        %s632 = ssub.s32 %s21, 2
        // Predicated region
        $region61: #{tpu_custom_call.1} parent=59 // pred_check
          %p633 = pneg %p155
        $region62: #{tpu_custom_call.1} parent=59 // pred_check_branch
          %635 = sbr.rel (%p633) target = $region64
        $region63: #{tpu_custom_call.1} parent=59 // pred_region
          %s636 = sand.u32 %s140, 1
          %s637 = scalar_lea.sflag [#allocation4], %s636
          %s638 = sand.u32 %s140, 1
          %s639 = smul.addr %s638, 16
          %s640 = scalar_lea.vmem [#allocation7], %s639
          %641 = dma.done %s637, 256
        $region64: #{tpu_custom_call.1} parent=59 // pred_fallthru
          _
        // Predicated region
        $region65: #{tpu_custom_call.1} parent=59 // pred_check
          %p642 = pneg %p183
        $region66: #{tpu_custom_call.1} parent=59 // pred_check_branch
          %644 = sbr.rel (%p642) target = $region68
        $region67: #{tpu_custom_call.1} parent=59 // pred_region
          %s645 = sand.u32 %s168, 1
          %s646 = scalar_lea.sflag [#allocation9], %s645
          %s647 = sand.u32 %s168, 1
          %s648 = smul.addr %s647, 16
          %s649 = scalar_lea.vmem [#allocation8], %s648
          %650 = dma.done %s646, 256
        $region68: #{tpu_custom_call.1} parent=59 // pred_fallthru
          _
        // Predicated region
        $region69: #{tpu_custom_call.1} parent=59 // pred_check
          %p651 = pneg %p211
        $region70: #{tpu_custom_call.1} parent=59 // pred_check_branch
          %653 = sbr.rel (%p651) target = $region72
        $region71: #{tpu_custom_call.1} parent=59 // pred_region
          %s654 = smul.u32 4, %s32
          %p655 = scmp.lt.s32.totalorder %s654, 7
          %s656 = scalar_select %p655, %s654, 7
          %p657 = scmp.lt.s32.totalorder %s33, 0
          %s658 = scalar_select %p657, %s33, 0
          %s659 = sadd.s32 %s658, %s656
          %s660 = smul.addr %s659, 8
          %s661 = scalar_lea.vmem %s6, %s660
        $region72: #{tpu_custom_call.1} parent=59 // pred_fallthru
          _
      $region60: #{tpu_custom_call.1} parent=5 // pred_fallthru
        _
    $region6: #{tpu_custom_call.1} parent=1 // loop_footer
      %s25 = sadd.s32 1, %s21
    $region7: #{tpu_custom_call.1} parent=1 // loop_footer_branch
      %20 = sbr.rel target = $region3
    $region8: #{tpu_custom_call.1} parent=1 // loop_exit
      _
    %662 = vsyncpa [#allocation3], 1
    %s663 = scalar_lea.sflag [#allocation3], 1
    %664 = vsyncpa %s663, 1
    %665 = vsyncpa [#allocation6], 1
    %666 = vsyncpa [#allocation4], 1
    %s667 = scalar_lea.sflag [#allocation4], 1
    %668 = vsyncpa %s667, 1
    %669 = vsyncpa [#allocation9], 1
    %s670 = scalar_lea.sflag [#allocation9], 1
    %671 = vsyncpa %s670, 1

</llo_original>
